<compile_context>
chip_gen: v5e
topology: v5e:2x2
jax: 0.10.0
libtpu: 0.0.40
codegen_flags: <defaults>
</compile_context>

<pallas_src>
import functools

import jax
import jax.numpy as jnp
from jax import lax
from jax.experimental import pallas as pl
from jax.experimental.pallas import tpu as pltpu

_LANE = 128


def _cdiv(a, b):
    return -(-a // b)


def _round_up(a, b):
    return _cdiv(a, b) * b


# ---------------------------------------------------------------------------
# Kernel
# ---------------------------------------------------------------------------
def _sepconv_kernel(xb_ref, xh_ref, w_ref, b_ref, o_ref, *, wp):
    """One grid step = one (batch image, flat-spatial lane tile).

    xb_ref: (1, Cin, TS)   bf16  body of the flat padded image for this tile
    xh_ref: (1, Cin, HB)   bf16  halo: the next HB lanes after the body
    w_ref : (9, Cout, Cin) bf16  folded (3x3 o 1x1) weights, tap-major
    b_ref : (Cout, 1)      f32   folded bias
    o_ref : (1, Cout, TS)  f32   flat output tile (channel-major; junk lanes
                                 at padded-width columns stripped by wrapper)
    """
    ts = o_ref.shape[-1]

    # Body + halo as one (Cin, TS+HB) slab: every tap window is then a static
    # lane-offset slice of it (no strided loads, no im2col materialization).
    slab = jnp.concatenate([xb_ref[0], xh_ref[0]], axis=-1)

    # 9-tap conv as 9 tiny (Cout, Cin) x (Cin, TS) MXU matmuls accumulated in
    # vregs (f32).  Cout lives in sublanes, the flat spatial axis in lanes, so
    # there is no VMEM accumulator round-trip and the final store is dense.
    # TODO(synk): the 9 K=4 dots could be merged into one K=36 dot by stacking
    # the tap slices along sublanes, trading 9 MXU issues for a sublane-packing
    # relayout; the kernel is HBM-bound at these sizes, so keep the simple form.
    acc = None
    for dh in range(3):
        for dw in range(3):
            off = dh * wp + dw
            patch = slab[:, off:off + ts]                          # (Cin, TS) bf16
            term = jnp.dot(w_ref[dh * 3 + dw], patch,
                           preferred_element_type=jnp.float32)     # (Cout, TS) f32
            acc = term if acc is None else acc + term

    o_ref[0] = (acc + b_ref[...]).astype(o_ref.dtype)


# ---------------------------------------------------------------------------
# Wrapper helpers
# ---------------------------------------------------------------------------
def _fold_params(w1_oihw, b1, w2_oi, b2):
    """Fold Conv1x1 into Conv3x3 (exact: no nonlinearity in between)."""
    w1 = w1_oihw.astype(jnp.float32)
    w2 = w2_oi.astype(jnp.float32)
    w_eff = jnp.einsum("om,mikl->oikl", w2, w1,
                       precision=lax.Precision.HIGHEST)    # (Cout, Cin, 3, 3)
    b_eff = (jnp.dot(w2, b1.astype(jnp.float32),
                     precision=lax.Precision.HIGHEST)
             + b2.astype(jnp.float32))                     # (Cout,)
    return w_eff, b_eff


# ---------------------------------------------------------------------------
# Public forward pass
# ---------------------------------------------------------------------------
@functools.partial(jax.jit, static_argnames=("stride", "tile_lanes"))
def seperable_convolution(x_nchw, w1_oihw, b1, w2_oi, b2, *, stride=1,
                          tile_lanes=2048):
    """Forward pass matching the PyTorch SeperableConvolution module (NCHW io)."""
    n, cin, h, w = (int(d) for d in x_nchw.shape)
    cout = int(w2_oi.shape[0])
    hp, wp = h + 2, w + 2

    # Folded weights/bias; bf16 MXU operands (accumulation stays f32).
    w_eff, b_eff = _fold_params(w1_oihw, b1, w2_oi, b2)
    w_taps = (jnp.transpose(w_eff, (2, 3, 0, 1))
              .reshape(9, cout, cin).astype(jnp.bfloat16))          # (9, Co, Ci)
    b_col = b_eff.reshape(cout, 1).astype(jnp.float32)

    # --- flat-spatial tiling parameters (all static Python ints) -----------
    ol = h * wp                                  # flat output extent (junk cols incl.)
    hb = _round_up(2 * wp + 2, _LANE)            # halo covers the largest tap offset
    ts = min(int(tile_lanes), _round_up(ol, _LANE))
    ts = _round_up(ts, hb)                       # halo block offsets must be hb-aligned
    if n * _cdiv(ol, ts) < 2:                    # v7x megacore: guarantee >=2 grid steps
        ts_half = _round_up(_cdiv(ol, 2), hb)
        if hb <= ts_half < ts:
            ts = ts_half
    ol_pad = _round_up(ol, ts)
    num_tiles = ol_pad // ts
    l_in = ol_pad + hb                           # flat input length incl. tail zeros

    # Layout prep (one cheap pass, NO transpose): zero-pad spatially, cast to
    # bf16, flatten (Hp, Wp) into the lane axis, zero-pad the tail so the last
    # tile's halo reads stay in bounds.
    x_pad = jnp.pad(x_nchw.astype(jnp.bfloat16),
                    ((0, 0), (0, 0), (1, 1), (1, 1)))               # (N,Ci,Hp,Wp)
    x_flat = x_pad.reshape(n, cin, hp * wp)
    x_flat = jnp.pad(x_flat, ((0, 0), (0, 0), (0, l_in - hp * wp)))  # (N,Ci,L_in)

    kernel = functools.partial(_sepconv_kernel, wp=wp)

    flops = 2 * n * ol_pad * 9 * cin * cout
    bytes_accessed = (n * cin * l_in * 2 + n * cout * ol_pad * 4
                      + 9 * cin * cout * 2 + cout * 4)

    blk = ts // hb   # halo block-index scale (ts is a multiple of hb)

    out_flat = pl.pallas_call(
        kernel,
        out_shape=jax.ShapeDtypeStruct((n, cout, ol_pad), jnp.float32),
        grid_spec=pltpu.PrefetchScalarGridSpec(
            num_scalar_prefetch=0,
            grid=(n, num_tiles),
            in_specs=[
                pl.BlockSpec((1, cin, ts), lambda b, t: (b, 0, t)),          # body
                pl.BlockSpec((1, cin, hb),
                             lambda b, t: (b, 0, (t + 1) * blk)),            # halo
                pl.BlockSpec((9, cout, cin), lambda b, t: (0, 0, 0)),        # weights
                pl.BlockSpec((cout, 1), lambda b, t: (0, 0)),                # bias
            ],
            out_specs=pl.BlockSpec((1, cout, ts), lambda b, t: (b, 0, t)),
        ),
        compiler_params=pltpu.CompilerParams(
            dimension_semantics=("parallel", "parallel")),
        cost_estimate=pl.CostEstimate(
            flops=flops, transcendentals=0, bytes_accessed=bytes_accessed),
    )(x_flat, x_flat, w_taps, b_col)

    # Strip the padded-width junk columns -> dense stride-1 NCHW output.
    out = out_flat[:, :, :h * wp].reshape(n, cout, h, wp)[:, :, :, :w]
    if stride > 1:
        # TODO(synk): stride>1 currently computes the dense stride-1 output and
        # subsamples it here; a lane-strided formulation would avoid the
        # ~stride^2 redundant compute / output traffic.
        out = out[:, :, ::stride, ::stride]
    return out


# ---------------------------------------------------------------------------
# References (pure JAX) for correctness checking
# ---------------------------------------------------------------------------
def _reference_module(x, w1, b1, w2, b2, *, stride=1):
    y = lax.conv_general_dilated(
        x, w1, window_strides=(stride, stride), padding=((1, 1), (1, 1)),
        dimension_numbers=("NCHW", "OIHW", "NCHW"))
    y = y + b1[None, :, None, None]
    z = lax.conv_general_dilated(
        y, w2[:, :, None, None], window_strides=(1, 1), padding="VALID",
        dimension_numbers=("NCHW", "OIHW", "NCHW"))
    return z + b2[None, :, None, None]


def _reference_folded_bf16(x, w1, b1, w2, b2, *, stride=1):
    # Mirrors the kernel arithmetic: folded weights, bf16 operands, f32 accum.
    w_eff, b_eff = _fold_params(w1, b1, w2, b2)
    w_q = w_eff.astype(jnp.bfloat16).astype(jnp.float32)
    x_q = x.astype(jnp.bfloat16).astype(jnp.float32)
    y = lax.conv_general_dilated(
        x_q, w_q, window_strides=(stride, stride), padding=((1, 1), (1, 1)),
        dimension_numbers=("NCHW", "OIHW", "NCHW"),
        preferred_element_type=jnp.float32)
    return y + b_eff[None, :, None, None]


if __name__ == "__main__":
    key = jax.random.PRNGKey(0)
    k_x, k_w1, k_b1, k_w2, k_b2 = jax.random.split(key, 5)

    N, Cin, Cout, H, W = 2, 4, 8, 16, 16
    stride = 1

    x = jax.random.normal(k_x, (N, Cin, H, W), dtype=jnp.float32)
    w1 = jax.random.normal(k_w1, (Cin, Cin, 3, 3), dtype=jnp.float32) * 0.1
    b1 = jax.random.normal(k_b1, (Cin,), dtype=jnp.float32) * 0.1
    w2 = jax.random.normal(k_w2, (Cout, Cin), dtype=jnp.float32) * 0.1
    b2 = jax.random.normal(k_b2, (Cout,), dtype=jnp.float32) * 0.1

    out = jax.block_until_ready(
        seperable_convolution(x, w1, b1, w2, b2, stride=stride))

    ref_tight = jax.block_until_ready(
        _reference_folded_bf16(x, w1, b1, w2, b2, stride=stride))
    ref_full = jax.block_until_ready(
        _reference_module(x, w1, b1, w2, b2, stride=stride))

    assert out.shape == ref_full.shape == (N, Cout, H, W)
    # Exact-arithmetic check (same bf16 operands / f32 accumulation as kernel).
    assert jnp.allclose(out, ref_tight, atol=2e-3, rtol=2e-3), \
        "mismatch vs folded bf16 reference"
    # Semantic check vs the original two-conv f32 module (bf16 rounding only).
    assert jnp.allclose(out, ref_full, atol=5e-2, rtol=5e-2), \
        "mismatch vs full-precision module reference"

    print("KERNEL_OK")
</pallas_src>

<mosaic_0001>
module attributes {stable_mosaic.version = 11 : i64} {
  func.func @_sepconv_kernel(%arg0: i32, %arg1: i32, %arg2: memref<1x4x384xbf16, #tpu.memory_space<vmem>>, %arg3: memref<1x4x128xbf16, #tpu.memory_space<vmem>>, %arg4: memref<9x8x4xbf16, #tpu.memory_space<vmem>>, %arg5: memref<8x1xf32, #tpu.memory_space<vmem>>, %arg6: memref<1x8x384xf32, #tpu.memory_space<vmem>>) attributes {dimension_semantics = [#tpu.dimension_semantics<parallel>, #tpu.dimension_semantics<parallel>], iteration_bounds = array<i64: 2, 1>, scalar_prefetch = 0 : i64, scratch_operands = 0 : i64, tpu.core_type = #tpu.core_type<tc>, window_params = [{transform_indices = @transform_0, window_bounds = array<i64: 1, 4, 384>}, {transform_indices = @transform_1, window_bounds = array<i64: 1, 4, 128>}, {pipeline_mode = #tpu.pipeline_mode<synchronous>, transform_indices = @transform_2, window_bounds = array<i64: 9, 8, 4>}, {pipeline_mode = #tpu.pipeline_mode<synchronous>, transform_indices = @transform_3, window_bounds = array<i64: 8, 1>}, {transform_indices = @transform_4, window_bounds = array<i64: 1, 8, 384>}]} {
    %c0 = arith.constant 0 : index
    %c0_0 = arith.constant 0 : index
    %c0_1 = arith.constant 0 : index
    %0 = vector.load %arg2[%c0, %c0_0, %c0_1] : memref<1x4x384xbf16, #tpu.memory_space<vmem>>, vector<1x4x384xbf16>
    %1 = vector.shape_cast %0 : vector<1x4x384xbf16> to vector<4x384xbf16>
    %c0_2 = arith.constant 0 : index
    %c0_3 = arith.constant 0 : index
    %c0_4 = arith.constant 0 : index
    %2 = vector.load %arg3[%c0_2, %c0_3, %c0_4] : memref<1x4x128xbf16, #tpu.memory_space<vmem>>, vector<1x4x128xbf16>
    %3 = vector.shape_cast %2 : vector<1x4x128xbf16> to vector<4x128xbf16>
    %4 = tpu.concatenate %1, %3 in 1 : vector<4x384xbf16>, vector<4x128xbf16> -> vector<4x512xbf16>
    %5 = vector.extract_strided_slice %4 {offsets = [0, 0], sizes = [4, 384], strides = [1, 1]} : vector<4x512xbf16> to vector<4x384xbf16>
    %c0_5 = arith.constant 0 : index
    %c0_6 = arith.constant 0 : index
    %c0_7 = arith.constant 0 : index
    %6 = vector.load %arg4[%c0_5, %c0_6, %c0_7] : memref<9x8x4xbf16, #tpu.memory_space<vmem>>, vector<1x8x4xbf16>
    %7 = vector.shape_cast %6 : vector<1x8x4xbf16> to vector<8x4xbf16>
    %cst = arith.constant dense<0.000000e+00> : vector<8x384xf32>
    %8 = tpu.matmul %7, %5, %cst {dimension_numbers = #tpu.dot_dimension_numbers<[1], [0], [0], [1], [0, 0, 1, 1], [], []>} : vector<8x4xbf16>, vector<4x384xbf16>, vector<8x384xf32> -> vector<8x384xf32>
    %9 = vector.extract_strided_slice %4 {offsets = [0, 1], sizes = [4, 384], strides = [1, 1]} : vector<4x512xbf16> to vector<4x384xbf16>
    %c1 = arith.constant 1 : index
    %c0_8 = arith.constant 0 : index
    %c0_9 = arith.constant 0 : index
    %10 = vector.load %arg4[%c1, %c0_8, %c0_9] : memref<9x8x4xbf16, #tpu.memory_space<vmem>>, vector<1x8x4xbf16>
    %11 = vector.shape_cast %10 : vector<1x8x4xbf16> to vector<8x4xbf16>
    %cst_10 = arith.constant dense<0.000000e+00> : vector<8x384xf32>
    %12 = tpu.matmul %11, %9, %cst_10 {dimension_numbers = #tpu.dot_dimension_numbers<[1], [0], [0], [1], [0, 0, 1, 1], [], []>} : vector<8x4xbf16>, vector<4x384xbf16>, vector<8x384xf32> -> vector<8x384xf32>
    %13 = arith.addf %8, %12 : vector<8x384xf32>
    %14 = vector.extract_strided_slice %4 {offsets = [0, 2], sizes = [4, 384], strides = [1, 1]} : vector<4x512xbf16> to vector<4x384xbf16>
    %c2 = arith.constant 2 : index
    %c0_11 = arith.constant 0 : index
    %c0_12 = arith.constant 0 : index
    %15 = vector.load %arg4[%c2, %c0_11, %c0_12] : memref<9x8x4xbf16, #tpu.memory_space<vmem>>, vector<1x8x4xbf16>
    %16 = vector.shape_cast %15 : vector<1x8x4xbf16> to vector<8x4xbf16>
    %cst_13 = arith.constant dense<0.000000e+00> : vector<8x384xf32>
    %17 = tpu.matmul %16, %14, %cst_13 {dimension_numbers = #tpu.dot_dimension_numbers<[1], [0], [0], [1], [0, 0, 1, 1], [], []>} : vector<8x4xbf16>, vector<4x384xbf16>, vector<8x384xf32> -> vector<8x384xf32>
    %18 = arith.addf %13, %17 : vector<8x384xf32>
    %19 = vector.extract_strided_slice %4 {offsets = [0, 18], sizes = [4, 384], strides = [1, 1]} : vector<4x512xbf16> to vector<4x384xbf16>
    %c3 = arith.constant 3 : index
    %c0_14 = arith.constant 0 : index
    %c0_15 = arith.constant 0 : index
    %20 = vector.load %arg4[%c3, %c0_14, %c0_15] : memref<9x8x4xbf16, #tpu.memory_space<vmem>>, vector<1x8x4xbf16>
    %21 = vector.shape_cast %20 : vector<1x8x4xbf16> to vector<8x4xbf16>
    %cst_16 = arith.constant dense<0.000000e+00> : vector<8x384xf32>
    %22 = tpu.matmul %21, %19, %cst_16 {dimension_numbers = #tpu.dot_dimension_numbers<[1], [0], [0], [1], [0, 0, 1, 1], [], []>} : vector<8x4xbf16>, vector<4x384xbf16>, vector<8x384xf32> -> vector<8x384xf32>
    %23 = arith.addf %18, %22 : vector<8x384xf32>
    %24 = vector.extract_strided_slice %4 {offsets = [0, 19], sizes = [4, 384], strides = [1, 1]} : vector<4x512xbf16> to vector<4x384xbf16>
    %c4 = arith.constant 4 : index
    %c0_17 = arith.constant 0 : index
    %c0_18 = arith.constant 0 : index
    %25 = vector.load %arg4[%c4, %c0_17, %c0_18] : memref<9x8x4xbf16, #tpu.memory_space<vmem>>, vector<1x8x4xbf16>
    %26 = vector.shape_cast %25 : vector<1x8x4xbf16> to vector<8x4xbf16>
    %cst_19 = arith.constant dense<0.000000e+00> : vector<8x384xf32>
    %27 = tpu.matmul %26, %24, %cst_19 {dimension_numbers = #tpu.dot_dimension_numbers<[1], [0], [0], [1], [0, 0, 1, 1], [], []>} : vector<8x4xbf16>, vector<4x384xbf16>, vector<8x384xf32> -> vector<8x384xf32>
    %28 = arith.addf %23, %27 : vector<8x384xf32>
    %29 = vector.extract_strided_slice %4 {offsets = [0, 20], sizes = [4, 384], strides = [1, 1]} : vector<4x512xbf16> to vector<4x384xbf16>
    %c5 = arith.constant 5 : index
    %c0_20 = arith.constant 0 : index
    %c0_21 = arith.constant 0 : index
    %30 = vector.load %arg4[%c5, %c0_20, %c0_21] : memref<9x8x4xbf16, #tpu.memory_space<vmem>>, vector<1x8x4xbf16>
    %31 = vector.shape_cast %30 : vector<1x8x4xbf16> to vector<8x4xbf16>
    %cst_22 = arith.constant dense<0.000000e+00> : vector<8x384xf32>
    %32 = tpu.matmul %31, %29, %cst_22 {dimension_numbers = #tpu.dot_dimension_numbers<[1], [0], [0], [1], [0, 0, 1, 1], [], []>} : vector<8x4xbf16>, vector<4x384xbf16>, vector<8x384xf32> -> vector<8x384xf32>
    %33 = arith.addf %28, %32 : vector<8x384xf32>
    %34 = vector.extract_strided_slice %4 {offsets = [0, 36], sizes = [4, 384], strides = [1, 1]} : vector<4x512xbf16> to vector<4x384xbf16>
    %c6 = arith.constant 6 : index
    %c0_23 = arith.constant 0 : index
    %c0_24 = arith.constant 0 : index
    %35 = vector.load %arg4[%c6, %c0_23, %c0_24] : memref<9x8x4xbf16, #tpu.memory_space<vmem>>, vector<1x8x4xbf16>
    %36 = vector.shape_cast %35 : vector<1x8x4xbf16> to vector<8x4xbf16>
    %cst_25 = arith.constant dense<0.000000e+00> : vector<8x384xf32>
    %37 = tpu.matmul %36, %34, %cst_25 {dimension_numbers = #tpu.dot_dimension_numbers<[1], [0], [0], [1], [0, 0, 1, 1], [], []>} : vector<8x4xbf16>, vector<4x384xbf16>, vector<8x384xf32> -> vector<8x384xf32>
    %38 = arith.addf %33, %37 : vector<8x384xf32>
    %39 = vector.extract_strided_slice %4 {offsets = [0, 37], sizes = [4, 384], strides = [1, 1]} : vector<4x512xbf16> to vector<4x384xbf16>
    %c7 = arith.constant 7 : index
    %c0_26 = arith.constant 0 : index
    %c0_27 = arith.constant 0 : index
    %40 = vector.load %arg4[%c7, %c0_26, %c0_27] : memref<9x8x4xbf16, #tpu.memory_space<vmem>>, vector<1x8x4xbf16>
    %41 = vector.shape_cast %40 : vector<1x8x4xbf16> to vector<8x4xbf16>
    %cst_28 = arith.constant dense<0.000000e+00> : vector<8x384xf32>
    %42 = tpu.matmul %41, %39, %cst_28 {dimension_numbers = #tpu.dot_dimension_numbers<[1], [0], [0], [1], [0, 0, 1, 1], [], []>} : vector<8x4xbf16>, vector<4x384xbf16>, vector<8x384xf32> -> vector<8x384xf32>
    %43 = arith.addf %38, %42 : vector<8x384xf32>
    %44 = vector.extract_strided_slice %4 {offsets = [0, 38], sizes = [4, 384], strides = [1, 1]} : vector<4x512xbf16> to vector<4x384xbf16>
    %c8 = arith.constant 8 : index
    %c0_29 = arith.constant 0 : index
    %c0_30 = arith.constant 0 : index
    %45 = vector.load %arg4[%c8, %c0_29, %c0_30] : memref<9x8x4xbf16, #tpu.memory_space<vmem>>, vector<1x8x4xbf16>
    %46 = vector.shape_cast %45 : vector<1x8x4xbf16> to vector<8x4xbf16>
    %cst_31 = arith.constant dense<0.000000e+00> : vector<8x384xf32>
    %47 = tpu.matmul %46, %44, %cst_31 {dimension_numbers = #tpu.dot_dimension_numbers<[1], [0], [0], [1], [0, 0, 1, 1], [], []>} : vector<8x4xbf16>, vector<4x384xbf16>, vector<8x384xf32> -> vector<8x384xf32>
    %48 = arith.addf %43, %47 : vector<8x384xf32>
    %c0_32 = arith.constant 0 : index
    %c0_33 = arith.constant 0 : index
    %49 = vector.load %arg5[%c0_32, %c0_33] : memref<8x1xf32, #tpu.memory_space<vmem>>, vector<8x1xf32>
    %50 = vector.broadcast %49 : vector<8x1xf32> to vector<8x384xf32>
    %51 = arith.addf %48, %50 : vector<8x384xf32>
    %c0_34 = arith.constant 0 : index
    %c0_35 = arith.constant 0 : index
    %c0_36 = arith.constant 0 : index
    %52 = vector.load %arg6[%c0_34, %c0_35, %c0_36] : memref<1x8x384xf32, #tpu.memory_space<vmem>>, vector<1x8x384xf32>
    %53 = vector.shape_cast %52 : vector<1x8x384xf32> to vector<8x384xf32>
    %54 = vector.shape_cast %51 : vector<8x384xf32> to vector<1x8x384xf32>
    tpu.vector_store %arg6[%c0_34, %c0_35, %c0_36], %54 {strides = array<i32>} : memref<1x8x384xf32, #tpu.memory_space<vmem>>, vector<1x8x384xf32>,
    return
  }
  func.func @transform_0(%arg0: i32, %arg1: i32) -> (i32, i32, i32) {
    %c0_i32 = arith.constant 0 : i32
    %c0_i32_0 = arith.constant 0 : i32
    return %arg0, %c0_i32, %arg1 : i32, i32, i32
  }
  func.func @transform_1(%arg0: i32, %arg1: i32) -> (i32, i32, i32) {
    %c1_i32 = arith.constant 1 : i32
    %0 = arith.addi %arg1, %c1_i32 : i32
    %c3_i32 = arith.constant 3 : i32
    %1 = arith.muli %0, %c3_i32 : i32
    %c0_i32 = arith.constant 0 : i32
    %c0_i32_0 = arith.constant 0 : i32
    return %arg0, %c0_i32, %1 : i32, i32, i32
  }
  func.func @transform_2(%arg0: i32, %arg1: i32) -> (i32, i32, i32) {
    %c0_i32 = arith.constant 0 : i32
    %c0_i32_0 = arith.constant 0 : i32
    %c0_i32_1 = arith.constant 0 : i32
    %c0_i32_2 = arith.constant 0 : i32
    return %c0_i32, %c0_i32_0, %c0_i32_1 : i32, i32, i32
  }
  func.func @transform_3(%arg0: i32, %arg1: i32) -> (i32, i32) {
    %c0_i32 = arith.constant 0 : i32
    %c0_i32_0 = arith.constant 0 : i32
    %c0_i32_1 = arith.constant 0 : i32
    return %c0_i32, %c0_i32_0 : i32, i32
  }
  func.func @transform_4(%arg0: i32, %arg1: i32) -> (i32, i32, i32) {
    %c0_i32 = arith.constant 0 : i32
    %c0_i32_0 = arith.constant 0 : i32
    return %arg0, %c0_i32, %arg1 : i32, i32, i32
  }
}

</mosaic_0001>

<llo_original>
// kernel: seperable_convolution.1
$region0: #{seperable_convolution.1}
  #allocation0 [shape = 'u32[]', space=smem, size = 0x4, offset = 0x4, fixed_abs, tag = 'smem constant byte address 0x4 - core index']
  #allocation1 [shape = 'u32[72,128]{1,0:T(1,128)}', space=vmem, size = 0x9000, scoped, tag = 'internal scratch']
  %s0 = inlined_call_operand.vmem [shape: bf16[2,4,512], index: 0, kind: input, shape index: {}, may-alias: {0,1}]
  %s1 = inlined_call_operand.vmem [shape: bf16[2,4,512], index: 1, kind: input, shape index: {}, may-alias: {0,1}]
  %s2 = inlined_call_operand.vmem [shape: bf16[9,8,4], index: 2, kind: input, shape index: {}]
  %s3 = inlined_call_operand.vmem [shape: f32[8,1], index: 3, kind: input, shape index: {}]
  %s4 = inlined_call_operand.vmem [shape: f32[2,8,384], index: 4, kind: output, shape index: {}]
  %s5 = sld [smem:[#allocation0]]
  $region49: #{seperable_convolution.1} parent=0
    _
  %s7 = ssub.s32 1, %s5
  %s8 = scalar_select 0, %s7, %s5
  loop: start=0, step=1, limit=4
  $region2: #{seperable_convolution.1} parent=0 // loop_pre_header
    _
  $region3: #{seperable_convolution.1} parent=0 // loop_header
    %s10 = sphi 0, %s14
    %p11 = scmp.ge.s32.totalorder %s10, 4
    %s17 = sphi 0, %s29
    %s18 = sphi 0, %s25
    %s19 = sphi 0, %s17
    %s20 = sphi 0, %s18
    %s21 = sphi 0, %s19
    %s22 = sphi 0, %s20
    %s34 = sphi 0, %s36
    %s37 = sphi 0, %s34
    %s38 = sphi 0, %s37
    %s54 = sphi 0, %s38
    %s66 = sphi 0, %s68
    %s69 = sphi 0, %s66
    %s70 = sphi 0, %s69
    %s86 = sphi 0, %s70
    %s90 = sphi 0, %s90
    %s92 = sphi 0, %s90
    %s93 = sphi 0, %s92
    %s107 = sphi 0, %s93
    %s111 = sphi 0, %s111
    %s113 = sphi 0, %s111
    %s114 = sphi 0, %s113
    %s128 = sphi 0, %s114
    %s136 = sphi 0, %s138
    %s139 = sphi 0, %s136
    %s140 = sphi 0, %s139
    %s156 = sphi 0, %s140
  $region4: #{seperable_convolution.1} parent=0 // loop_header_branch
    %13 = sbr.rel (%p11) target = $region8
  $region5: #{seperable_convolution.1} parent=0 // loop_body
    %s15 = ssub.s32 %s10, 1
    %s16 = ssub.s32 %s10, 2
    %s23 = sadd.s32 1, %s18
    %p24 = scmp.ge.s32.totalorder %s23, 1
    %s25 = scalar_select %p24, 0, %s23
    %s26 = sadd.s32 1, %s17
    %s27 = scalar_select %p24, %s26, %s17
    %p28 = scmp.ge.s32.totalorder %s27, 2
    %s29 = scalar_select %p28, 0, %s27
    %s30 = ssub.s32 %s17, %s29
    %s31 = ssub.s32 %s18, %s25
    %s32 = sor.u32 %s30, %s31
    %p33 = scmp.eq.s32.totalorder %s32, 0
    %s35 = sadd.s32 %s34, 1
    %s36 = scalar_select %p33, %s34, %s35
    %p39 = pneg %p33
    %p40 = scmp.eq.s32.totalorder %s10, 1
    %p41 = por %p39, %p40
    %p42 = scmp.ne.s32.totalorder %s34, %s37
    %p43 = scmp.eq.s32.totalorder %s10, 0
    %p44 = por %p42, %p43
    %p45 = scmp.ne.s32.totalorder %s34, %s37
    %p46 = scmp.eq.s32.totalorder %s15, 1
    %p47 = por %p45, %p46
    %p48 = scmp.ne.s32.totalorder %s37, %s38
    %p49 = scmp.eq.s32.totalorder %s15, 0
    %p50 = por %p48, %p49
    %p51 = scmp.ne.s32.totalorder %s37, %s38
    %p52 = scmp.eq.s32.totalorder %s16, 1
    %p53 = por %p51, %p52
    %p55 = scmp.ne.s32.totalorder %s38, %s54
    %p56 = scmp.eq.s32.totalorder %s16, 0
    %p57 = por %p55, %p56
    %s58 = sadd.s32 %s18, 1
    %s59 = smul.u32 %s58, 3
    %s60 = sadd.s32 %s25, 1
    %s61 = smul.u32 %s60, 3
    %s62 = ssub.s32 %s17, %s29
    %s63 = ssub.s32 %s59, %s61
    %s64 = sor.u32 %s62, %s63
    %p65 = scmp.eq.s32.totalorder %s64, 0
    %s67 = sadd.s32 %s66, 1
    %s68 = scalar_select %p65, %s66, %s67
    %p71 = pneg %p65
    %p72 = scmp.eq.s32.totalorder %s10, 1
    %p73 = por %p71, %p72
    %p74 = scmp.ne.s32.totalorder %s66, %s69
    %p75 = scmp.eq.s32.totalorder %s10, 0
    %p76 = por %p74, %p75
    %p77 = scmp.ne.s32.totalorder %s66, %s69
    %p78 = scmp.eq.s32.totalorder %s15, 1
    %p79 = por %p77, %p78
    %p80 = scmp.ne.s32.totalorder %s69, %s70
    %p81 = scmp.eq.s32.totalorder %s15, 0
    %p82 = por %p80, %p81
    %p83 = scmp.ne.s32.totalorder %s69, %s70
    %p84 = scmp.eq.s32.totalorder %s16, 1
    %p85 = por %p83, %p84
    %p87 = scmp.ne.s32.totalorder %s70, %s86
    %p88 = scmp.eq.s32.totalorder %s16, 0
    %p89 = por %p87, %p88
    %s91 = sadd.s32 %s90, 1
    %p94 = scmp.eq.s32.totalorder %s10, 1
    %p95 = scmp.ne.s32.totalorder %s90, %s92
    %p96 = scmp.eq.s32.totalorder %s10, 0
    %p97 = por %p95, %p96
    %p98 = scmp.ne.s32.totalorder %s90, %s92
    %p99 = scmp.eq.s32.totalorder %s15, 1
    %p100 = por %p98, %p99
    %p101 = scmp.ne.s32.totalorder %s92, %s93
    %p102 = scmp.eq.s32.totalorder %s15, 0
    %p103 = por %p101, %p102
    %p104 = scmp.ne.s32.totalorder %s92, %s93
    %p105 = scmp.eq.s32.totalorder %s16, 1
    %p106 = por %p104, %p105
    %p108 = scmp.ne.s32.totalorder %s93, %s107
    %p109 = scmp.eq.s32.totalorder %s16, 0
    %p110 = por %p108, %p109
    %s112 = sadd.s32 %s111, 1
    %p115 = scmp.eq.s32.totalorder %s10, 1
    %p116 = scmp.ne.s32.totalorder %s111, %s113
    %p117 = scmp.eq.s32.totalorder %s10, 0
    %p118 = por %p116, %p117
    %p119 = scmp.ne.s32.totalorder %s111, %s113
    %p120 = scmp.eq.s32.totalorder %s15, 1
    %p121 = por %p119, %p120
    %p122 = scmp.ne.s32.totalorder %s113, %s114
    %p123 = scmp.eq.s32.totalorder %s15, 0
    %p124 = por %p122, %p123
    %p125 = scmp.ne.s32.totalorder %s113, %s114
    %p126 = scmp.eq.s32.totalorder %s16, 1
    %p127 = por %p125, %p126
    %p129 = scmp.ne.s32.totalorder %s114, %s128
    %p130 = scmp.eq.s32.totalorder %s16, 0
    %p131 = por %p129, %p130
    %s132 = ssub.s32 %s17, %s29
    %s133 = ssub.s32 %s18, %s25
    %s134 = sor.u32 %s132, %s133
    %p135 = scmp.eq.s32.totalorder %s134, 0
    %s137 = sadd.s32 %s136, 1
    %s138 = scalar_select %p135, %s136, %s137
    %p141 = pneg %p135
    %p142 = scmp.eq.s32.totalorder %s10, 1
    %p143 = por %p141, %p142
    %p144 = scmp.ne.s32.totalorder %s136, %s139
    %p145 = scmp.eq.s32.totalorder %s10, 0
    %p146 = por %p144, %p145
    %p147 = scmp.ne.s32.totalorder %s136, %s139
    %p148 = scmp.eq.s32.totalorder %s15, 1
    %p149 = por %p147, %p148
    %p150 = scmp.ne.s32.totalorder %s139, %s140
    %p151 = scmp.eq.s32.totalorder %s15, 0
    %p152 = por %p150, %p151
    %p153 = scmp.ne.s32.totalorder %s139, %s140
    %p154 = scmp.eq.s32.totalorder %s16, 1
    %p155 = por %p153, %p154
    %p157 = scmp.ne.s32.totalorder %s140, %s156
    %p158 = scmp.eq.s32.totalorder %s16, 0
    %p159 = por %p157, %p158
    %p160 = scmp.le.s32.totalorder 1, %s10
    %p161 = scmp.lt.s32.totalorder %s10, 3
    %p162 = pnand %p160, %p161
    %p163 = pneg %p162
    // Predicated region
    $region9: #{seperable_convolution.1} parent=5 // pred_check
      _
    $region10: #{seperable_convolution.1} parent=5 // pred_check_branch
      %165 = sbr.rel (%p162) target = $region12
    $region11: #{seperable_convolution.1} parent=5 // pred_region
      %s166 = ssub.s32 %s10, 1
      // Predicated region
      $region13: #{seperable_convolution.1} parent=11 // pred_check
        %p167 = pneg %p103
      $region14: #{seperable_convolution.1} parent=11 // pred_check_branch
        %169 = sbr.rel (%p167) target = $region16
      $region15: #{seperable_convolution.1} parent=11 // pred_region
        _
      $region16: #{seperable_convolution.1} parent=11 // pred_fallthru
        _
      // Predicated region
      $region17: #{seperable_convolution.1} parent=11 // pred_check
        %p170 = pneg %p124
      $region18: #{seperable_convolution.1} parent=11 // pred_check_branch
        %172 = sbr.rel (%p170) target = $region20
      $region19: #{seperable_convolution.1} parent=11 // pred_region
        _
      $region20: #{seperable_convolution.1} parent=11 // pred_fallthru
        _
    $region12: #{seperable_convolution.1} parent=5 // pred_fallthru
      _
    %p173 = scmp.lt.s32.totalorder %s10, 2
    // Predicated region
    $region21: #{seperable_convolution.1} parent=5 // pred_check
      %p174 = pneg %p173
    $region22: #{seperable_convolution.1} parent=5 // pred_check_branch
      %176 = sbr.rel (%p174) target = $region24
    $region23: #{seperable_convolution.1} parent=5 // pred_region
      // Predicated region
      $region25: #{seperable_convolution.1} parent=23 // pred_check
        %p177 = pneg %p44
      $region26: #{seperable_convolution.1} parent=23 // pred_check_branch
        %179 = sbr.rel (%p177) target = $region28
      $region27: #{seperable_convolution.1} parent=23 // pred_region
        %s180 = smul.u32 3, %s18
        %s181 = ssub.s32 4, %s180
        %p182 = scmp.lt.s32.totalorder %s181, 3
        %s183 = scalar_select %p182, %s181, 3
        %s184 = smul.u32 2, %s183
        %p185 = scmp.lt.s32.totalorder %s17, 1
        %s186 = scalar_select %p185, %s17, 1
        %p187 = scmp.lt.s32.totalorder %s180, 3
        %s188 = scalar_select %p187, %s180, 3
        %s189 = smul.addr %s186, 4
        %s190 = sadd.s32 %s188, %s189
        %s191 = smul.addr %s190, 2
        %s192 = scalar_lea.vmem %s0, %s191
        %s193 = smul.u32 3, %s18
        %s194 = ssub.s32 4, %s193
        %p195 = scmp.lt.s32.totalorder %s194, 3
        %s196 = scalar_select %p195, %s194, 3
        %s197 = smul.u32 2, %s196
      $region28: #{seperable_convolution.1} parent=23 // pred_fallthru
        _
      // Predicated region
      $region29: #{seperable_convolution.1} parent=23 // pred_check
        %p198 = pneg %p76
      $region30: #{seperable_convolution.1} parent=23 // pred_check_branch
        %200 = sbr.rel (%p198) target = $region32
      $region31: #{seperable_convolution.1} parent=23 // pred_region
        %s201 = sadd.s32 %s18, 1
        %s202 = smul.u32 %s201, 3
        %p203 = scmp.lt.s32.totalorder %s17, 1
        %s204 = scalar_select %p203, %s17, 1
        %p205 = scmp.lt.s32.totalorder %s202, 3
        %s206 = scalar_select %p205, %s202, 3
        %s207 = smul.addr %s204, 4
        %s208 = sadd.s32 %s206, %s207
        %s209 = smul.addr %s208, 2
        %s210 = scalar_lea.vmem %s1, %s209
        %s211 = sadd.s32 %s18, 1
        %s212 = smul.u32 %s211, 3
      $region32: #{seperable_convolution.1} parent=23 // pred_fallthru
        _
    $region24: #{seperable_convolution.1} parent=5 // pred_fallthru
      _
    %p213 = scmp.le.s32.totalorder 1, %s10
    %p214 = scmp.lt.s32.totalorder %s10, 3
    %p215 = pnand %p213, %p214
    %p216 = pneg %p215
    // Predicated region
    $region33: #{seperable_convolution.1} parent=5 // pred_check
      _
    $region34: #{seperable_convolution.1} parent=5 // pred_check_branch
      %218 = sbr.rel (%p215) target = $region36
    $region35: #{seperable_convolution.1} parent=5 // pred_region
      %s219 = ssub.s32 %s10, 1
      %s220 = smul.u32 3, %s20
      %s221 = ssub.s32 4, %s220
      %p222 = scmp.lt.s32.totalorder %s221, 3
      %s223 = scalar_select %p222, %s221, 3
      %s224 = smul.u32 2, %s223
      %p225 = scmp.lt.s32.totalorder %s19, 1
      %s226 = scalar_select %p225, %s19, 1
      %p227 = scmp.lt.s32.totalorder %s220, 3
      %s228 = scalar_select %p227, %s220, 3
      %s229 = smul.addr %s226, 4
      %s230 = sadd.s32 %s228, %s229
      %s231 = smul.addr %s230, 2
      %s232 = scalar_lea.vmem %s0, %s231
      %p233 = pneg %p50
      %p234 = pneg %p47
      %s235 = sadd.s32 %s20, 1
      %s236 = smul.u32 %s235, 3
      %p237 = scmp.lt.s32.totalorder %s19, 1
      %s238 = scalar_select %p237, %s19, 1
      %p239 = scmp.lt.s32.totalorder %s236, 3
      %s240 = scalar_select %p239, %s236, 3
      %s241 = smul.addr %s238, 4
      %s242 = sadd.s32 %s240, %s241
      %s243 = smul.addr %s242, 2
      %s244 = scalar_lea.vmem %s1, %s243
      %p245 = pneg %p82
      %p246 = pneg %p79
      %p247 = pneg %p103
      %p248 = pneg %p100
      %p249 = pneg %p124
      %p250 = pneg %p121
      %p251 = pneg %p152
      %p252 = pneg %p149
      %s253 = smul.u32 3, %s20
      %p254 = scmp.lt.s32.totalorder %s19, 1
      %s255 = scalar_select %p254, %s19, 1
      %p256 = scmp.lt.s32.totalorder %s253, 2
      %s257 = scalar_select %p256, %s253, 2
      %s258 = smul.addr %s255, 3
      %s259 = sadd.s32 %s257, %s258
      %s260 = smul.addr %s259, 8
      %s261 = scalar_lea.vmem %s4, %s260
      %s262 = smul.u32 3, %s20
      %s263 = ssub.s32 4, %s262
      %p264 = scmp.lt.s32.totalorder %s263, 3
      %s265 = scalar_select %p264, %s263, 3
      %s266 = smul.u32 2, %s265
      %p267 = scmp.lt.s32.totalorder %s19, 1
      %s268 = scalar_select %p267, %s19, 1
      %p269 = scmp.lt.s32.totalorder %s262, 3
      %s270 = scalar_select %p269, %s262, 3
      %s271 = smul.addr %s268, 4
      %s272 = sadd.s32 %s270, %s271
      %s273 = smul.addr %s272, 2
      %s274 = scalar_lea.vmem %s0, %s273
      %s275 = smul.u32 3, %s20
      %s276 = ssub.s32 4, %s275
      %p277 = scmp.lt.s32.totalorder %s276, 3
      %s278 = scalar_select %p277, %s276, 3
      %s279 = smul.u32 2, %s278
      %s280 = sadd.s32 %s20, 1
      %s281 = smul.u32 %s280, 3
      %p282 = scmp.lt.s32.totalorder %s19, 1
      %s283 = scalar_select %p282, %s19, 1
      %p284 = scmp.lt.s32.totalorder %s281, 3
      %s285 = scalar_select %p284, %s281, 3
      %s286 = smul.addr %s283, 4
      %s287 = sadd.s32 %s285, %s286
      %s288 = smul.addr %s287, 2
      %s289 = scalar_lea.vmem %s1, %s288
      %s290 = sadd.s32 %s20, 1
      %s291 = smul.u32 %s290, 3
      %s292 = smul.u32 3, %s20
      %p293 = scmp.lt.s32.totalorder %s19, 1
      %s294 = scalar_select %p293, %s19, 1
      %p295 = scmp.lt.s32.totalorder %s292, 2
      %s296 = scalar_select %p295, %s292, 2
      %s297 = smul.addr %s294, 3
      %s298 = sadd.s32 %s296, %s297
      %s299 = smul.addr %s298, 8
      %s300 = scalar_lea.vmem %s4, %s299
      %s301 = smul.u32 3, %s20
      %v303 = vld [vmem:[%s274] sm:$0x3f]
      %v304 = vld [vmem:[%s289] sm:$0x3]
      %306 = vst [vmem:[#allocation1] ss:$4 sm:$0xff] %v303
      %v307 = vld.sshfl [vmem:[#allocation1] sm:$0xff pattern:$0x73625140]
      %v309 = vld.sshfl [vmem:[#allocation1 + $0x8] sm:$0xff pattern:$0x73625140]
      %v311 = vld.sshfl [vmem:[#allocation1 + $0x10] sm:$0xff pattern:$0x73625140]
      %v313 = vld [vmem:[%s2] sm:$0xf]
      %s314 = scalar_lea.vmem %s2, 4
      %v315 = vld [vmem:[%s314] sm:$0xf]
      %317 = vrot.lane.b32.xlu0 %v307, 127
      %v318 = vpop.permute.xlu0 %317
      %319 = vrot.lane.b32.xlu0 %v309, 127
      %v320 = vpop.permute.xlu0 %319
      %321 = vrot.lane.b32.xlu0 %v311, 127
      %v322 = vpop.permute.xlu0 %321
      %323 = vrot.lane.b32.xlu0 %v304, 127
      %v324 = vpop.permute.xlu0 %323
      %vm325 = vcmask 1039360
      %v326 = vsel %vm325, %v318, %v320
      %v327 = vsel %vm325, %v320, %v322
      %v328 = vsel %vm325, %v322, %v324
      %vm329 = vcmask 31744
      %v331 = vsel %vm329, %v315, 0
      %vm333 = vcmask 1041408
      %v335 = vsel %vm333, %v326, 0
      %v338 = vsel %vm333, %v327, 0
      %v341 = vsel %vm333, %v328, 0
      %343 = vmatpush.bf16.msra.mxu0 0
      %344 = vmatpush.bf16.msra.mxu0 0
      %345 = vmatpush.bf16.msra.mxu0 0
      %346 = vmatpush.bf16.msra.mxu0 0
      %347 = vmatpush.bf16.msra.mxu0 0
      %348 = vmatpush.bf16.msra.mxu0 0
      %349 = vmatpush.bf16.msra.mxu0 0
      %350 = vmatpush.bf16.msra.mxu0 %v335
      %351 = vmatmul.bf16.gmra.mxu0 %v331
      %v352 = vpop.f32.mrf.mxu0
      %v353 = vadd.f32 0.0, %v352
      %v354 = vpop.f32.mrf.mxu0
      %355 = vdwg.mxu0
      %356 = vmatpush.bf16.msra.mxu0 0
      %357 = vmatpush.bf16.msra.mxu0 0
      %358 = vmatpush.bf16.msra.mxu0 0
      %359 = vmatpush.bf16.msra.mxu0 0
      %360 = vmatpush.bf16.msra.mxu0 0
      %361 = vmatpush.bf16.msra.mxu0 0
      %362 = vmatpush.bf16.msra.mxu0 0
      %363 = vmatpush.bf16.msra.mxu0 %v338
      %364 = vmatmul.bf16.gmra.mxu0 %v331
      %v365 = vpop.f32.mrf.mxu0
      %v366 = vadd.f32 0.0, %v365
      %v367 = vpop.f32.mrf.mxu0
      %368 = vdwg.mxu0
      %369 = vmatpush.bf16.msra.mxu0 0
      %370 = vmatpush.bf16.msra.mxu0 0
      %371 = vmatpush.bf16.msra.mxu0 0
      %372 = vmatpush.bf16.msra.mxu0 0
      %373 = vmatpush.bf16.msra.mxu0 0
      %374 = vmatpush.bf16.msra.mxu0 0
      %375 = vmatpush.bf16.msra.mxu0 0
      %376 = vmatpush.bf16.msra.mxu0 %v341
      %377 = vmatmul.bf16.gmra.mxu0 %v331
      %v378 = vpop.f32.mrf.mxu0
      %v379 = vadd.f32 0.0, %v378
      %v380 = vpop.f32.mrf.mxu0
      %381 = vdwg.mxu0
      %v383 = vsel %vm329, %v313, 0
      %v385 = vsel %vm333, %v307, 0
      %v387 = vsel %vm333, %v309, 0
      %v389 = vsel %vm333, %v311, 0
      %391 = vmatpush.bf16.msra.mxu0 0
      %392 = vmatpush.bf16.msra.mxu0 0
      %393 = vmatpush.bf16.msra.mxu0 0
      %394 = vmatpush.bf16.msra.mxu0 0
      %395 = vmatpush.bf16.msra.mxu0 0
      %396 = vmatpush.bf16.msra.mxu0 0
      %397 = vmatpush.bf16.msra.mxu0 0
      %398 = vmatpush.bf16.msra.mxu0 %v385
      %399 = vmatmul.bf16.gmra.mxu0 %v383
      %v400 = vpop.f32.mrf.mxu0
      %v401 = vadd.f32 %v353, %v400
      %v402 = vpop.f32.mrf.mxu0
      %403 = vdwg.mxu0
      %404 = vmatpush.bf16.msra.mxu0 0
      %405 = vmatpush.bf16.msra.mxu0 0
      %406 = vmatpush.bf16.msra.mxu0 0
      %407 = vmatpush.bf16.msra.mxu0 0
      %408 = vmatpush.bf16.msra.mxu0 0
      %409 = vmatpush.bf16.msra.mxu0 0
      %410 = vmatpush.bf16.msra.mxu0 0
      %411 = vmatpush.bf16.msra.mxu0 %v387
      %412 = vmatmul.bf16.gmra.mxu0 %v383
      %v413 = vpop.f32.mrf.mxu0
      %v414 = vadd.f32 %v366, %v413
      %v415 = vpop.f32.mrf.mxu0
      %416 = vdwg.mxu0
      %417 = vmatpush.bf16.msra.mxu0 0
      %418 = vmatpush.bf16.msra.mxu0 0
      %419 = vmatpush.bf16.msra.mxu0 0
      %420 = vmatpush.bf16.msra.mxu0 0
      %421 = vmatpush.bf16.msra.mxu0 0
      %422 = vmatpush.bf16.msra.mxu0 0
      %423 = vmatpush.bf16.msra.mxu0 0
      %424 = vmatpush.bf16.msra.mxu0 %v389
      %425 = vmatmul.bf16.gmra.mxu0 %v383
      %v426 = vpop.f32.mrf.mxu0
      %v427 = vadd.f32 %v379, %v426
      %v428 = vpop.f32.mrf.mxu0
      %429 = vdwg.mxu0
      %s430 = scalar_lea.vmem %s2, 8
      %v431 = vld [vmem:[%s430] sm:$0xf]
      %432 = vrot.lane.b32.xlu0 %v307, 126
      %v433 = vpop.permute.xlu0 %432
      %434 = vrot.lane.b32.xlu0 %v309, 126
      %v435 = vpop.permute.xlu0 %434
      %436 = vrot.lane.b32.xlu0 %v311, 126
      %v437 = vpop.permute.xlu0 %436
      %438 = vrot.lane.b32.xlu0 %v304, 126
      %v439 = vpop.permute.xlu0 %438
      %vm440 = vcmask 1031168
      %v441 = vsel %vm440, %v433, %v435
      %v442 = vsel %vm440, %v435, %v437
      %v443 = vsel %vm440, %v437, %v439
      %v445 = vsel %vm329, %v431, 0
      %v448 = vsel %vm333, %v441, 0
      %v451 = vsel %vm333, %v442, 0
      %v454 = vsel %vm333, %v443, 0
      %456 = vmatpush.bf16.msra.mxu0 0
      %457 = vmatpush.bf16.msra.mxu0 0
      %458 = vmatpush.bf16.msra.mxu0 0
      %459 = vmatpush.bf16.msra.mxu0 0
      %460 = vmatpush.bf16.msra.mxu0 0
      %461 = vmatpush.bf16.msra.mxu0 0
      %462 = vmatpush.bf16.msra.mxu0 0
      %463 = vmatpush.bf16.msra.mxu0 %v448
      %464 = vmatmul.bf16.gmra.mxu0 %v445
      %v465 = vpop.f32.mrf.mxu0
      %v466 = vadd.f32 0.0, %v465
      %v467 = vpop.f32.mrf.mxu0
      %468 = vdwg.mxu0
      %469 = vmatpush.bf16.msra.mxu0 0
      %470 = vmatpush.bf16.msra.mxu0 0
      %471 = vmatpush.bf16.msra.mxu0 0
      %472 = vmatpush.bf16.msra.mxu0 0
      %473 = vmatpush.bf16.msra.mxu0 0
      %474 = vmatpush.bf16.msra.mxu0 0
      %475 = vmatpush.bf16.msra.mxu0 0
      %476 = vmatpush.bf16.msra.mxu0 %v451
      %477 = vmatmul.bf16.gmra.mxu0 %v445
      %v478 = vpop.f32.mrf.mxu0
      %v479 = vadd.f32 0.0, %v478
      %v480 = vpop.f32.mrf.mxu0
      %481 = vdwg.mxu0
      %482 = vmatpush.bf16.msra.mxu0 0
      %483 = vmatpush.bf16.msra.mxu0 0
      %484 = vmatpush.bf16.msra.mxu0 0
      %485 = vmatpush.bf16.msra.mxu0 0
      %486 = vmatpush.bf16.msra.mxu0 0
      %487 = vmatpush.bf16.msra.mxu0 0
      %488 = vmatpush.bf16.msra.mxu0 0
      %489 = vmatpush.bf16.msra.mxu0 %v454
      %490 = vmatmul.bf16.gmra.mxu0 %v445
      %v491 = vpop.f32.mrf.mxu0
      %v492 = vadd.f32 0.0, %v491
      %v493 = vpop.f32.mrf.mxu0
      %494 = vdwg.mxu0
      %v495 = vadd.f32 %v401, %v466
      %v496 = vadd.f32 %v414, %v479
      %v497 = vadd.f32 %v427, %v492
      %s498 = scalar_lea.vmem %s2, 12
      %v499 = vld [vmem:[%s498] sm:$0xf]
      %500 = vrot.lane.b32.xlu0 %v307, 110
      %v501 = vpop.permute.xlu0 %500
      %502 = vrot.lane.b32.xlu0 %v309, 110
      %v503 = vpop.permute.xlu0 %502
      %504 = vrot.lane.b32.xlu0 %v311, 110
      %v505 = vpop.permute.xlu0 %504
      %506 = vrot.lane.b32.xlu0 %v304, 110
      %v507 = vpop.permute.xlu0 %506
      %vm508 = vcmask 900096
      %v509 = vsel %vm508, %v501, %v503
      %v510 = vsel %vm508, %v503, %v505
      %v511 = vsel %vm508, %v505, %v507
      %v513 = vsel %vm329, %v499, 0
      %v516 = vsel %vm333, %v509, 0
      %v519 = vsel %vm333, %v510, 0
      %v522 = vsel %vm333, %v511, 0
      %524 = vmatpush.bf16.msra.mxu0 0
      %525 = vmatpush.bf16.msra.mxu0 0
      %526 = vmatpush.bf16.msra.mxu0 0
      %527 = vmatpush.bf16.msra.mxu0 0
      %528 = vmatpush.bf16.msra.mxu0 0
      %529 = vmatpush.bf16.msra.mxu0 0
      %530 = vmatpush.bf16.msra.mxu0 0
      %531 = vmatpush.bf16.msra.mxu0 %v516
      %532 = vmatmul.bf16.gmra.mxu0 %v513
      %v533 = vpop.f32.mrf.mxu0
      %v534 = vadd.f32 0.0, %v533
      %v535 = vpop.f32.mrf.mxu0
      %536 = vdwg.mxu0
      %537 = vmatpush.bf16.msra.mxu0 0
      %538 = vmatpush.bf16.msra.mxu0 0
      %539 = vmatpush.bf16.msra.mxu0 0
      %540 = vmatpush.bf16.msra.mxu0 0
      %541 = vmatpush.bf16.msra.mxu0 0
      %542 = vmatpush.bf16.msra.mxu0 0
      %543 = vmatpush.bf16.msra.mxu0 0
      %544 = vmatpush.bf16.msra.mxu0 %v519
      %545 = vmatmul.bf16.gmra.mxu0 %v513
      %v546 = vpop.f32.mrf.mxu0
      %v547 = vadd.f32 0.0, %v546
      %v548 = vpop.f32.mrf.mxu0
      %549 = vdwg.mxu0
      %550 = vmatpush.bf16.msra.mxu0 0
      %551 = vmatpush.bf16.msra.mxu0 0
      %552 = vmatpush.bf16.msra.mxu0 0
      %553 = vmatpush.bf16.msra.mxu0 0
      %554 = vmatpush.bf16.msra.mxu0 0
      %555 = vmatpush.bf16.msra.mxu0 0
      %556 = vmatpush.bf16.msra.mxu0 0
      %557 = vmatpush.bf16.msra.mxu0 %v522
      %558 = vmatmul.bf16.gmra.mxu0 %v513
      %v559 = vpop.f32.mrf.mxu0
      %v560 = vadd.f32 0.0, %v559
      %v561 = vpop.f32.mrf.mxu0
      %562 = vdwg.mxu0
      %v563 = vadd.f32 %v495, %v534
      %v564 = vadd.f32 %v496, %v547
      %v565 = vadd.f32 %v497, %v560
      %s566 = scalar_lea.vmem %s2, 16
      %v567 = vld [vmem:[%s566] sm:$0xf]
      %568 = vrot.lane.b32.xlu0 %v307, 109
      %v569 = vpop.permute.xlu0 %568
      %570 = vrot.lane.b32.xlu0 %v309, 109
      %v571 = vpop.permute.xlu0 %570
      %572 = vrot.lane.b32.xlu0 %v311, 109
      %v573 = vpop.permute.xlu0 %572
      %574 = vrot.lane.b32.xlu0 %v304, 109
      %v575 = vpop.permute.xlu0 %574
      %vm576 = vcmask 891904
      %v577 = vsel %vm576, %v569, %v571
      %v578 = vsel %vm576, %v571, %v573
      %v579 = vsel %vm576, %v573, %v575
      %v581 = vsel %vm329, %v567, 0
      %v584 = vsel %vm333, %v577, 0
      %v587 = vsel %vm333, %v578, 0
      %v590 = vsel %vm333, %v579, 0
      %592 = vmatpush.bf16.msra.mxu0 0
      %593 = vmatpush.bf16.msra.mxu0 0
      %594 = vmatpush.bf16.msra.mxu0 0
      %595 = vmatpush.bf16.msra.mxu0 0
      %596 = vmatpush.bf16.msra.mxu0 0
      %597 = vmatpush.bf16.msra.mxu0 0
      %598 = vmatpush.bf16.msra.mxu0 0
      %599 = vmatpush.bf16.msra.mxu0 %v584
      %600 = vmatmul.bf16.gmra.mxu0 %v581
      %v601 = vpop.f32.mrf.mxu0
      %v602 = vadd.f32 0.0, %v601
      %v603 = vpop.f32.mrf.mxu0
      %604 = vdwg.mxu0
      %605 = vmatpush.bf16.msra.mxu0 0
      %606 = vmatpush.bf16.msra.mxu0 0
      %607 = vmatpush.bf16.msra.mxu0 0
      %608 = vmatpush.bf16.msra.mxu0 0
      %609 = vmatpush.bf16.msra.mxu0 0
      %610 = vmatpush.bf16.msra.mxu0 0
      %611 = vmatpush.bf16.msra.mxu0 0
      %612 = vmatpush.bf16.msra.mxu0 %v587
      %613 = vmatmul.bf16.gmra.mxu0 %v581
      %v614 = vpop.f32.mrf.mxu0
      %v615 = vadd.f32 0.0, %v614
      %v616 = vpop.f32.mrf.mxu0
      %617 = vdwg.mxu0
      %618 = vmatpush.bf16.msra.mxu0 0
      %619 = vmatpush.bf16.msra.mxu0 0
      %620 = vmatpush.bf16.msra.mxu0 0
      %621 = vmatpush.bf16.msra.mxu0 0
      %622 = vmatpush.bf16.msra.mxu0 0
      %623 = vmatpush.bf16.msra.mxu0 0
      %624 = vmatpush.bf16.msra.mxu0 0
      %625 = vmatpush.bf16.msra.mxu0 %v590
      %626 = vmatmul.bf16.gmra.mxu0 %v581
      %v627 = vpop.f32.mrf.mxu0
      %v628 = vadd.f32 0.0, %v627
      %v629 = vpop.f32.mrf.mxu0
      %630 = vdwg.mxu0
      %v631 = vadd.f32 %v563, %v602
      %v632 = vadd.f32 %v564, %v615
      %v633 = vadd.f32 %v565, %v628
      %s634 = scalar_lea.vmem %s2, 20
      %v635 = vld [vmem:[%s634] sm:$0xf]
      %636 = vrot.lane.b32.xlu0 %v307, 108
      %v637 = vpop.permute.xlu0 %636
      %638 = vrot.lane.b32.xlu0 %v309, 108
      %v639 = vpop.permute.xlu0 %638
      %640 = vrot.lane.b32.xlu0 %v311, 108
      %v641 = vpop.permute.xlu0 %640
      %642 = vrot.lane.b32.xlu0 %v304, 108
      %v643 = vpop.permute.xlu0 %642
      %vm644 = vcmask 883712
      %v645 = vsel %vm644, %v637, %v639
      %v646 = vsel %vm644, %v639, %v641
      %v647 = vsel %vm644, %v641, %v643
      %v649 = vsel %vm329, %v635, 0
      %v652 = vsel %vm333, %v645, 0
      %v655 = vsel %vm333, %v646, 0
      %v658 = vsel %vm333, %v647, 0
      %660 = vmatpush.bf16.msra.mxu0 0
      %661 = vmatpush.bf16.msra.mxu0 0
      %662 = vmatpush.bf16.msra.mxu0 0
      %663 = vmatpush.bf16.msra.mxu0 0
      %664 = vmatpush.bf16.msra.mxu0 0
      %665 = vmatpush.bf16.msra.mxu0 0
      %666 = vmatpush.bf16.msra.mxu0 0
      %667 = vmatpush.bf16.msra.mxu0 %v652
      %668 = vmatmul.bf16.gmra.mxu0 %v649
      %v669 = vpop.f32.mrf.mxu0
      %v670 = vadd.f32 0.0, %v669
      %v671 = vpop.f32.mrf.mxu0
      %672 = vdwg.mxu0
      %673 = vmatpush.bf16.msra.mxu0 0
      %674 = vmatpush.bf16.msra.mxu0 0
      %675 = vmatpush.bf16.msra.mxu0 0
      %676 = vmatpush.bf16.msra.mxu0 0
      %677 = vmatpush.bf16.msra.mxu0 0
      %678 = vmatpush.bf16.msra.mxu0 0
      %679 = vmatpush.bf16.msra.mxu0 0
      %680 = vmatpush.bf16.msra.mxu0 %v655
      %681 = vmatmul.bf16.gmra.mxu0 %v649
      %v682 = vpop.f32.mrf.mxu0
      %v683 = vadd.f32 0.0, %v682
      %v684 = vpop.f32.mrf.mxu0
      %685 = vdwg.mxu0
      %686 = vmatpush.bf16.msra.mxu0 0
      %687 = vmatpush.bf16.msra.mxu0 0
      %688 = vmatpush.bf16.msra.mxu0 0
      %689 = vmatpush.bf16.msra.mxu0 0
      %690 = vmatpush.bf16.msra.mxu0 0
      %691 = vmatpush.bf16.msra.mxu0 0
      %692 = vmatpush.bf16.msra.mxu0 0
      %693 = vmatpush.bf16.msra.mxu0 %v658
      %694 = vmatmul.bf16.gmra.mxu0 %v649
      %v695 = vpop.f32.mrf.mxu0
      %v696 = vadd.f32 0.0, %v695
      %v697 = vpop.f32.mrf.mxu0
      %698 = vdwg.mxu0
      %v699 = vadd.f32 %v631, %v670
      %v700 = vadd.f32 %v632, %v683
      %v701 = vadd.f32 %v633, %v696
      %s702 = scalar_lea.vmem %s2, 24
      %v703 = vld [vmem:[%s702] sm:$0xf]
      %704 = vrot.lane.b32.xlu0 %v307, 92
      %v705 = vpop.permute.xlu0 %704
      %706 = vrot.lane.b32.xlu0 %v309, 92
      %v707 = vpop.permute.xlu0 %706
      %708 = vrot.lane.b32.xlu0 %v311, 92
      %v709 = vpop.permute.xlu0 %708
      %710 = vrot.lane.b32.xlu0 %v304, 92
      %v711 = vpop.permute.xlu0 %710
      %vm712 = vcmask 752640
      %v713 = vsel %vm712, %v705, %v707
      %v714 = vsel %vm712, %v707, %v709
      %v715 = vsel %vm712, %v709, %v711
      %v717 = vsel %vm329, %v703, 0
      %v720 = vsel %vm333, %v713, 0
      %v723 = vsel %vm333, %v714, 0
      %v726 = vsel %vm333, %v715, 0
      %728 = vmatpush.bf16.msra.mxu0 0
      %729 = vmatpush.bf16.msra.mxu0 0
      %730 = vmatpush.bf16.msra.mxu0 0
      %731 = vmatpush.bf16.msra.mxu0 0
      %732 = vmatpush.bf16.msra.mxu0 0
      %733 = vmatpush.bf16.msra.mxu0 0
      %734 = vmatpush.bf16.msra.mxu0 0
      %735 = vmatpush.bf16.msra.mxu0 %v720
      %736 = vmatmul.bf16.gmra.mxu0 %v717
      %v737 = vpop.f32.mrf.mxu0
      %v738 = vadd.f32 0.0, %v737
      %v739 = vpop.f32.mrf.mxu0
      %740 = vdwg.mxu0
      %741 = vmatpush.bf16.msra.mxu0 0
      %742 = vmatpush.bf16.msra.mxu0 0
      %743 = vmatpush.bf16.msra.mxu0 0
      %744 = vmatpush.bf16.msra.mxu0 0
      %745 = vmatpush.bf16.msra.mxu0 0
      %746 = vmatpush.bf16.msra.mxu0 0
      %747 = vmatpush.bf16.msra.mxu0 0
      %748 = vmatpush.bf16.msra.mxu0 %v723
      %749 = vmatmul.bf16.gmra.mxu0 %v717
      %v750 = vpop.f32.mrf.mxu0
      %v751 = vadd.f32 0.0, %v750
      %v752 = vpop.f32.mrf.mxu0
      %753 = vdwg.mxu0
      %754 = vmatpush.bf16.msra.mxu0 0
      %755 = vmatpush.bf16.msra.mxu0 0
      %756 = vmatpush.bf16.msra.mxu0 0
      %757 = vmatpush.bf16.msra.mxu0 0
      %758 = vmatpush.bf16.msra.mxu0 0
      %759 = vmatpush.bf16.msra.mxu0 0
      %760 = vmatpush.bf16.msra.mxu0 0
      %761 = vmatpush.bf16.msra.mxu0 %v726
      %762 = vmatmul.bf16.gmra.mxu0 %v717
      %v763 = vpop.f32.mrf.mxu0
      %v764 = vadd.f32 0.0, %v763
      %v765 = vpop.f32.mrf.mxu0
      %766 = vdwg.mxu0
      %v767 = vadd.f32 %v699, %v738
      %v768 = vadd.f32 %v700, %v751
      %v769 = vadd.f32 %v701, %v764
      %s770 = scalar_lea.vmem %s2, 28
      %v771 = vld [vmem:[%s770] sm:$0xf]
      %772 = vrot.lane.b32.xlu0 %v307, 91
      %v773 = vpop.permute.xlu0 %772
      %774 = vrot.lane.b32.xlu0 %v309, 91
      %v775 = vpop.permute.xlu0 %774
      %776 = vrot.lane.b32.xlu0 %v311, 91
      %v777 = vpop.permute.xlu0 %776
      %778 = vrot.lane.b32.xlu0 %v304, 91
      %v779 = vpop.permute.xlu0 %778
      %vm780 = vcmask 744448
      %v781 = vsel %vm780, %v773, %v775
      %v782 = vsel %vm780, %v775, %v777
      %v783 = vsel %vm780, %v777, %v779
      %v785 = vsel %vm329, %v771, 0
      %v788 = vsel %vm333, %v781, 0
      %v791 = vsel %vm333, %v782, 0
      %v794 = vsel %vm333, %v783, 0
      %796 = vmatpush.bf16.msra.mxu0 0
      %797 = vmatpush.bf16.msra.mxu0 0
      %798 = vmatpush.bf16.msra.mxu0 0
      %799 = vmatpush.bf16.msra.mxu0 0
      %800 = vmatpush.bf16.msra.mxu0 0
      %801 = vmatpush.bf16.msra.mxu0 0
      %802 = vmatpush.bf16.msra.mxu0 0
      %803 = vmatpush.bf16.msra.mxu0 %v788
      %804 = vmatmul.bf16.gmra.mxu0 %v785
      %v805 = vpop.f32.mrf.mxu0
      %v806 = vadd.f32 0.0, %v805
      %v807 = vpop.f32.mrf.mxu0
      %808 = vdwg.mxu0
      %809 = vmatpush.bf16.msra.mxu0 0
      %810 = vmatpush.bf16.msra.mxu0 0
      %811 = vmatpush.bf16.msra.mxu0 0
      %812 = vmatpush.bf16.msra.mxu0 0
      %813 = vmatpush.bf16.msra.mxu0 0
      %814 = vmatpush.bf16.msra.mxu0 0
      %815 = vmatpush.bf16.msra.mxu0 0
      %816 = vmatpush.bf16.msra.mxu0 %v791
      %817 = vmatmul.bf16.gmra.mxu0 %v785
      %v818 = vpop.f32.mrf.mxu0
      %v819 = vadd.f32 0.0, %v818
      %v820 = vpop.f32.mrf.mxu0
      %821 = vdwg.mxu0
      %822 = vmatpush.bf16.msra.mxu0 0
      %823 = vmatpush.bf16.msra.mxu0 0
      %824 = vmatpush.bf16.msra.mxu0 0
      %825 = vmatpush.bf16.msra.mxu0 0
      %826 = vmatpush.bf16.msra.mxu0 0
      %827 = vmatpush.bf16.msra.mxu0 0
      %828 = vmatpush.bf16.msra.mxu0 0
      %829 = vmatpush.bf16.msra.mxu0 %v794
      %830 = vmatmul.bf16.gmra.mxu0 %v785
      %v831 = vpop.f32.mrf.mxu0
      %v832 = vadd.f32 0.0, %v831
      %v833 = vpop.f32.mrf.mxu0
      %834 = vdwg.mxu0
      %v835 = vadd.f32 %v767, %v806
      %v836 = vadd.f32 %v768, %v819
      %v837 = vadd.f32 %v769, %v832
      %s838 = scalar_lea.vmem %s2, 32
      %v839 = vld [vmem:[%s838] sm:$0xf]
      %840 = vrot.lane.b32.xlu0 %v307, 90
      %v841 = vpop.permute.xlu0 %840
      %842 = vrot.lane.b32.xlu0 %v309, 90
      %v843 = vpop.permute.xlu0 %842
      %844 = vrot.lane.b32.xlu0 %v311, 90
      %v845 = vpop.permute.xlu0 %844
      %846 = vrot.lane.b32.xlu0 %v304, 90
      %v847 = vpop.permute.xlu0 %846
      %vm848 = vcmask 736256
      %v849 = vsel %vm848, %v841, %v843
      %v850 = vsel %vm848, %v843, %v845
      %v851 = vsel %vm848, %v845, %v847
      %v853 = vsel %vm329, %v839, 0
      %v856 = vsel %vm333, %v849, 0
      %v859 = vsel %vm333, %v850, 0
      %v862 = vsel %vm333, %v851, 0
      %864 = vmatpush.bf16.msra.mxu0 0
      %865 = vmatpush.bf16.msra.mxu0 0
      %866 = vmatpush.bf16.msra.mxu0 0
      %867 = vmatpush.bf16.msra.mxu0 0
      %868 = vmatpush.bf16.msra.mxu0 0
      %869 = vmatpush.bf16.msra.mxu0 0
      %870 = vmatpush.bf16.msra.mxu0 0
      %871 = vmatpush.bf16.msra.mxu0 %v856
      %872 = vmatmul.bf16.gmra.mxu0 %v853
      %v873 = vpop.f32.mrf.mxu0
      %v874 = vadd.f32 0.0, %v873
      %v875 = vpop.f32.mrf.mxu0
      %876 = vdwg.mxu0
      %877 = vmatpush.bf16.msra.mxu0 0
      %878 = vmatpush.bf16.msra.mxu0 0
      %879 = vmatpush.bf16.msra.mxu0 0
      %880 = vmatpush.bf16.msra.mxu0 0
      %881 = vmatpush.bf16.msra.mxu0 0
      %882 = vmatpush.bf16.msra.mxu0 0
      %883 = vmatpush.bf16.msra.mxu0 0
      %884 = vmatpush.bf16.msra.mxu0 %v859
      %885 = vmatmul.bf16.gmra.mxu0 %v853
      %v886 = vpop.f32.mrf.mxu0
      %v887 = vadd.f32 0.0, %v886
      %v888 = vpop.f32.mrf.mxu0
      %889 = vdwg.mxu0
      %890 = vmatpush.bf16.msra.mxu0 0
      %891 = vmatpush.bf16.msra.mxu0 0
      %892 = vmatpush.bf16.msra.mxu0 0
      %893 = vmatpush.bf16.msra.mxu0 0
      %894 = vmatpush.bf16.msra.mxu0 0
      %895 = vmatpush.bf16.msra.mxu0 0
      %896 = vmatpush.bf16.msra.mxu0 0
      %897 = vmatpush.bf16.msra.mxu0 %v862
      %898 = vmatmul.bf16.gmra.mxu0 %v853
      %v899 = vpop.f32.mrf.mxu0
      %v900 = vadd.f32 0.0, %v899
      %v901 = vpop.f32.mrf.mxu0
      %902 = vdwg.mxu0
      %v903 = vadd.f32 %v835, %v874
      %v904 = vadd.f32 %v836, %v887
      %v905 = vadd.f32 %v837, %v900
      %v906 = vld [vmem:[%s3] sm:$0xff]
      %908 = vset.pattern.permute.xlu0 0
      %909 = vperm.xlu0 %908, %v906
      %v910 = vpop.permute.xlu0 %909
      %v912 = vadd.f32 %v903, %v910
      %v913 = vadd.f32 %v904, %v910
      %v914 = vadd.f32 %v905, %v910
      %915 = vst [vmem:[%s300] sm:$0xff] %v912
      %916 = vst [vmem:[%s300 + $0x8] sm:$0xff] %v913
      %917 = vst [vmem:[%s300 + $0x10] sm:$0xff] %v914
      %s918 = smul.u32 3, %s20
      %p919 = scmp.lt.s32.totalorder %s19, 1
      %s920 = scalar_select %p919, %s19, 1
      %p921 = scmp.lt.s32.totalorder %s918, 2
      %s922 = scalar_select %p921, %s918, 2
      %s923 = smul.addr %s920, 3
      %s924 = sadd.s32 %s922, %s923
      %s925 = smul.addr %s924, 8
      %s926 = scalar_lea.vmem %s4, %s925
      // Predicated region
      $region37: #{seperable_convolution.1} parent=35 // pred_check
        %p927 = pneg %p149
      $region38: #{seperable_convolution.1} parent=35 // pred_check_branch
        %929 = sbr.rel (%p927) target = $region40
      $region39: #{seperable_convolution.1} parent=35 // pred_region
        %s930 = smul.u32 3, %s20
      $region40: #{seperable_convolution.1} parent=35 // pred_fallthru
        _
    $region36: #{seperable_convolution.1} parent=5 // pred_fallthru
      _
    %p931 = scmp.le.s32.totalorder 2, %s10
    // Predicated region
    $region41: #{seperable_convolution.1} parent=5 // pred_check
      %p932 = pneg %p931
    $region42: #{seperable_convolution.1} parent=5 // pred_check_branch
      %934 = sbr.rel (%p932) target = $region44
    $region43: #{seperable_convolution.1} parent=5 // pred_region
      %s935 = ssub.s32 %s10, 2
      // Predicated region
      $region45: #{seperable_convolution.1} parent=43 // pred_check
        %p936 = pneg %p155
      $region46: #{seperable_convolution.1} parent=43 // pred_check_branch
        %938 = sbr.rel (%p936) target = $region48
      $region47: #{seperable_convolution.1} parent=43 // pred_region
        %s939 = smul.u32 3, %s22
        %p940 = scmp.lt.s32.totalorder %s21, 1
        %s941 = scalar_select %p940, %s21, 1
        %p942 = scmp.lt.s32.totalorder %s939, 2
        %s943 = scalar_select %p942, %s939, 2
        %s944 = smul.addr %s941, 3
        %s945 = sadd.s32 %s943, %s944
        %s946 = smul.addr %s945, 8
        %s947 = scalar_lea.vmem %s4, %s946
      $region48: #{seperable_convolution.1} parent=43 // pred_fallthru
        _
    $region44: #{seperable_convolution.1} parent=5 // pred_fallthru
      _
  $region6: #{seperable_convolution.1} parent=0 // loop_footer
    %s14 = sadd.s32 1, %s10
  $region7: #{seperable_convolution.1} parent=0 // loop_footer_branch
    %9 = sbr.rel target = $region3
  $region8: #{seperable_convolution.1} parent=0 // loop_exit
    _

</llo_original>
